<compile_context>
chip_gen: v6e
topology: v6e:2x2x1
jax: 0.10.0
libtpu: 0.0.40
codegen_flags: <defaults>
</compile_context>

<pallas_src>
import jax
import jax.numpy as jnp
from jax.experimental import pallas as pl
from jax.experimental.pallas import tpu as pltpu


_LANES = 512           # lane-dense last dim (multiple of 128)
_MAX_BLOCK_ROWS = 512  # 512x512 f32 block = 1 MiB per f32 operand


def _mask_kernel(x_ref, m_ref, o_ref):
    # Elementwise multiply; mask arrives as int8 (0/1) and is cast to the
    # activation dtype on the VPU (free filler in a memory-bound kernel).
    o_ref[...] = x_ref[...] * m_ref[...].astype(x_ref.dtype)


def _round_up(a, b):
    return ((a + b - 1) // b) * b


def mask_layer_forward(x, mask):
    """out = x * mask (mask has identical shape to x; values are 0/1)."""
    assert x.shape == mask.shape
    orig_shape = x.shape
    dtype = x.dtype
    total = int(x.size)

    # Mask is a Bernoulli 0/1 tensor, so the int8 round trip is exact and
    # cuts its HBM footprint 4x vs f32.
    m_i8 = mask.astype(jnp.int8)

    x_flat = x.reshape(-1)
    m_flat = m_i8.reshape(-1)

    # Flatten to a lane-dense (rows, 512) layout.
    rows = pl.cdiv(total, _LANES)
    if rows <= _MAX_BLOCK_ROWS:
        # Block equals full array dims -> no (8,128)/(32,128) divisibility
        # requirement, and no row padding needed.
        block_rows = rows
        rows_padded = rows
    else:
        # 512 rows: multiple of 8 (f32) and 32 (int8) -> tiling rule satisfied.
        block_rows = _MAX_BLOCK_ROWS
        rows_padded = _round_up(rows, block_rows)

    padded_total = rows_padded * _LANES
    if padded_total != total:
        pad = padded_total - total
        x_flat = jnp.pad(x_flat, (0, pad))
        m_flat = jnp.pad(m_flat, (0, pad))

    x2 = x_flat.reshape(rows_padded, _LANES)
    m2 = m_flat.reshape(rows_padded, _LANES)

    block = (block_rows, _LANES)
    spec = pl.BlockSpec(block, lambda i: (i, 0))
    grid = (rows_padded // block_rows,)

    out2 = pl.pallas_call(
        _mask_kernel,
        out_shape=jax.ShapeDtypeStruct((rows_padded, _LANES), dtype),
        grid=grid,
        in_specs=[spec, spec],
        out_specs=spec,
        compiler_params=pltpu.CompilerParams(
            dimension_semantics=("parallel",)
        ),
    )(x2, m2)

    out_flat = out2.reshape(-1)
    if padded_total != total:
        out_flat = out_flat[:total]
    return out_flat.reshape(orig_shape)


def make_mask(key, output_shape, probability):
    # torch.Tensor(shape).bernoulli_(1 - probability): 1 with prob (1 - p).
    # Stored as int8 (0/1) to halve/quarter HBM traffic; exact vs f32 mask.
    return jax.random.bernoulli(key, p=1.0 - probability,
                                shape=output_shape).astype(jnp.int8)


if __name__ == "__main__":
    key = jax.random.PRNGKey(0)
    k_x, k_m = jax.random.split(key)

    # Small NCHW activation consistent with the module.
    x_shape = (2, 4, 16, 16)
    probability = 0.3

    x = jax.random.normal(k_x, x_shape, dtype=jnp.float32)
    mask = make_mask(k_m, x_shape, probability)

    out = mask_layer_forward(x, mask)
    out = jax.block_until_ready(out)

    # Correctness check against the plain JAX reference.
    ref = x * mask.astype(x.dtype)
    assert out.shape == x.shape
    assert jnp.allclose(out, ref), "mismatch vs reference"

    print("KERNEL_OK")
</pallas_src>

<mosaic_0001>
module attributes {stable_mosaic.version = 11 : i64} {
  func.func @_mask_kernel(%arg0: i32, %arg1: memref<4x512xf32, #tpu.memory_space<vmem>>, %arg2: memref<4x512xi8, #tpu.memory_space<vmem>>, %arg3: memref<4x512xf32, #tpu.memory_space<vmem>>) attributes {dimension_semantics = [#tpu.dimension_semantics<parallel>], iteration_bounds = array<i64: 1>, scalar_prefetch = 0 : i64, scratch_operands = 0 : i64, tpu.core_type = #tpu.core_type<tc>, window_params = [{transform_indices = @transform_0, window_bounds = array<i64: 4, 512>}, {transform_indices = @transform_1, window_bounds = array<i64: 4, 512>}, {transform_indices = @transform_2, window_bounds = array<i64: 4, 512>}]} {
    %c0 = arith.constant 0 : index
    %c0_0 = arith.constant 0 : index
    %0 = vector.load %arg1[%c0, %c0_0] : memref<4x512xf32, #tpu.memory_space<vmem>>, vector<4x512xf32>
    %c0_1 = arith.constant 0 : index
    %c0_2 = arith.constant 0 : index
    %1 = vector.load %arg2[%c0_1, %c0_2] : memref<4x512xi8, #tpu.memory_space<vmem>>, vector<4x512xi8>
    %2 = arith.sitofp %1 : vector<4x512xi8> to vector<4x512xf32>
    %3 = arith.mulf %0, %2 : vector<4x512xf32>
    %c0_3 = arith.constant 0 : index
    %c0_4 = arith.constant 0 : index
    %4 = vector.load %arg3[%c0_3, %c0_4] : memref<4x512xf32, #tpu.memory_space<vmem>>, vector<4x512xf32>
    tpu.vector_store %arg3[%c0_3, %c0_4], %3 {strides = array<i32>} : memref<4x512xf32, #tpu.memory_space<vmem>>, vector<4x512xf32>,
    return
  }
  func.func @transform_0(%arg0: i32) -> (i32, i32) {
    %c0_i32 = arith.constant 0 : i32
    %c0_i32_0 = arith.constant 0 : i32
    return %arg0, %c0_i32 : i32, i32
  }
  func.func @transform_1(%arg0: i32) -> (i32, i32) {
    %c0_i32 = arith.constant 0 : i32
    %c0_i32_0 = arith.constant 0 : i32
    return %arg0, %c0_i32 : i32, i32
  }
  func.func @transform_2(%arg0: i32) -> (i32, i32) {
    %c0_i32 = arith.constant 0 : i32
    %c0_i32_0 = arith.constant 0 : i32
    return %arg0, %c0_i32 : i32, i32
  }
}

</mosaic_0001>

<llo_original>
// kernel: tpu_custom_call.1
$region0: #{tpu_custom_call.1}
  #allocation0 [shape = 'u32[]', space=smem, size = 0x4, offset = 0x4, fixed_abs, tag = 'smem constant byte address 0x4 - core index']
  #allocation1 [shape = 'u32[144,128]{1,0:T(1,128)}', space=vmem, size = 0x12000, scoped, tag = 'internal scratch']
  %s0 = inlined_call_operand.hbm [shape: f32[4,512], index: 0, kind: input, shape index: {}]
  %s1 = inlined_call_operand.hbm [shape: s8[4,512], index: 1, kind: input, shape index: {}]
  %s2 = inlined_call_operand.hbm [shape: f32[4,512], index: 2, kind: output, shape index: {}]
  %s3 = sld [smem:[#allocation0]]
  $region26: #{tpu_custom_call.1} parent=0
    _
  %s5 = ssub.s32 1, %s3
  %s6 = scalar_select 0, %s5, %s3
  $region1: #{tpu_custom_call.1} parent=0
    #allocation2 [shape = 'u8[8192]{0}', space=vmem, size = 0x2000, scoped, tag = 'input window, operand 0, single buffered']
    #allocation3 [shape = 's32[1]{0}', space=sflag, size = 0x4, scoped, tag = 'scoped memory for tpu_custom_call.1']
    #allocation4 [shape = 's32[1]{0}', space=sflag, size = 0x4, scoped, tag = 'scoped memory for tpu_custom_call.1']
    #allocation5 [shape = 'u8[2048]{0}', space=vmem, size = 0x800, scoped, tag = 'input window, operand 1, single buffered']
    #allocation6 [shape = 's32[1]{0}', space=sflag, size = 0x4, scoped, tag = 'scoped memory for tpu_custom_call.1']
    #allocation7 [shape = 'u8[8192]{0}', space=vmem, size = 0x2000, scoped, tag = 'output window, operand 0, single buffered']
    %7 = vsyncpa [#allocation3], 0
    %8 = vsyncpa [#allocation6], 0
    %9 = vsyncpa [#allocation4], 0
    // Predicated region
    $region2: #{tpu_custom_call.1} parent=1 // pred_check
      _
    $region3: #{tpu_custom_call.1} parent=1 // pred_check_branch
      %11 = sbr.rel (0) target = $region5
    $region4: #{tpu_custom_call.1} parent=1 // pred_region
      %s13 = ssub.s32 256, 256
      %14 = vsyncadd [#allocation3], %s13
      %s16 = sshll.u32 [#allocation2], 4
      %s17 = int_to_ptr.vmem [resolvable:$true] %s16
      %19 = dma.hbm_to_vmem [thread:$0]  %s0, 256, %s17, [#allocation3]
    $region5: #{tpu_custom_call.1} parent=1 // pred_fallthru
      _
    // Predicated region
    $region6: #{tpu_custom_call.1} parent=1 // pred_check
      _
    $region7: #{tpu_custom_call.1} parent=1 // pred_check_branch
      %21 = sbr.rel (0) target = $region9
    $region8: #{tpu_custom_call.1} parent=1 // pred_region
      %s23 = ssub.s32 64, 64
      %24 = vsyncadd [#allocation6], %s23
      %s26 = sshll.u32 [#allocation5], 4
      %s27 = int_to_ptr.vmem [resolvable:$true] %s26
      %29 = dma.hbm_to_vmem [thread:$0]  %s1, 64, %s27, [#allocation6]
    $region9: #{tpu_custom_call.1} parent=1 // pred_fallthru
      _
    // Predicated region
    $region10: #{tpu_custom_call.1} parent=1 // pred_check
      _
    $region11: #{tpu_custom_call.1} parent=1 // pred_check_branch
      %31 = sbr.rel (0) target = $region13
    $region12: #{tpu_custom_call.1} parent=1 // pred_region
      %32 = dma.done [#allocation3], 256
    $region13: #{tpu_custom_call.1} parent=1 // pred_fallthru
      _
    // Predicated region
    $region14: #{tpu_custom_call.1} parent=1 // pred_check
      _
    $region15: #{tpu_custom_call.1} parent=1 // pred_check_branch
      %34 = sbr.rel (0) target = $region17
    $region16: #{tpu_custom_call.1} parent=1 // pred_region
      %35 = dma.done [#allocation6], 64
    $region17: #{tpu_custom_call.1} parent=1 // pred_fallthru
      _
    %v36 = vld [vmem:[#allocation2] sm:$0xff]
    %v37 = vld [vmem:[#allocation2 + $0x8] sm:$0xff]
    %v38 = vld [vmem:[#allocation5] sm:$0xf]
    %v39 = vunpack.c.0.s8 %v38
    %v40 = vunpack.c.1.s8 %v38
    %v41 = vcvt.s32.f32 %v39
    %v42 = vcvt.s32.f32 %v40
    %v43 = vmul.f32 %v36, %v41
    %v44 = vmul.f32 %v37, %v42
    %45 = vst [vmem:[#allocation7] sm:$0xff] %v43
    %46 = vst [vmem:[#allocation7 + $0x8] sm:$0xff] %v44
    // Predicated region
    $region18: #{tpu_custom_call.1} parent=1 // pred_check
      _
    $region19: #{tpu_custom_call.1} parent=1 // pred_check_branch
      %48 = sbr.rel (0) target = $region21
    $region20: #{tpu_custom_call.1} parent=1 // pred_region
      %s50 = ssub.s32 256, 256
      %51 = vsyncadd [#allocation4], %s50
      %s53 = sshll.u32 [#allocation7], 4
      %s54 = int_to_ptr.vmem [resolvable:$true] %s53
      %56 = dma.vmem_to_hbm [thread:$0]  %s54, 256, %s2, [#allocation4]
    $region21: #{tpu_custom_call.1} parent=1 // pred_fallthru
      _
    // Predicated region
    $region22: #{tpu_custom_call.1} parent=1 // pred_check
      _
    $region23: #{tpu_custom_call.1} parent=1 // pred_check_branch
      %58 = sbr.rel (0) target = $region25
    $region24: #{tpu_custom_call.1} parent=1 // pred_region
      %59 = dma.done [#allocation4], 256
    $region25: #{tpu_custom_call.1} parent=1 // pred_fallthru
      _
    %60 = vsyncpa [#allocation3], 1
    %61 = vsyncpa [#allocation6], 1
    %62 = vsyncpa [#allocation4], 1

</llo_original>
